<compile_context>
chip_gen: v5e
topology: v5e:2x2
jax: 0.10.0
libtpu: 0.0.40
codegen_flags: <defaults>
</compile_context>

<pallas_src>
import jax
import jax.numpy as jnp
from jax.experimental import pallas as pl
from jax.experimental.pallas import tpu as pltpu

# Synthetic values for the external constants in DQN.py
OBSERVATION_SIZE = 6
NUM_DIRECTIONS = 4
N_STATES = 4 + 2 * OBSERVATION_SIZE      # 16
N_ACTIONS = NUM_DIRECTIONS               # 4
H1, H2 = 128, 64

_MAX_TB = 1024            # cap on rows per grid step
_XLA_BATCH_CUTOFF = 32    # tiny inference batches: plain XLA is cheaper


def _round_up(n, m):
    return ((n + m - 1) // m) * m


def _pick_tile(B):
    """Rows per grid step: aim for <= 2 balanced steps (one per TensorCore on
    v7x; 1-2 steps is also optimal on single-TC v5e/v6e), capped at _MAX_TB."""
    return max(8, min(_MAX_TB, _round_up(pl.cdiv(B, 2), 8)))


def _mlp_kernel(x_ref, w1_ref, b1_ref, w2_ref, b2_ref, w3_ref, b3_ref, o_ref):
    # x arrives as f32 (single HBM pass); cast to bf16 on the VPU so the MXU
    # runs bf16 inputs with f32 accumulation.
    x = x_ref[...].astype(jnp.bfloat16)

    # fc1 + ReLU
    h1 = jnp.dot(x, w1_ref[...], preferred_element_type=jnp.float32) + b1_ref[...]
    h1 = jnp.maximum(h1, 0.0)

    # fc2 + LeakyReLU(0.01)   (f32 elementwise: no bf16 VPU on v5e)
    h2 = jnp.dot(h1.astype(jnp.bfloat16), w2_ref[...],
                 preferred_element_type=jnp.float32) + b2_ref[...]
    h2 = jnp.where(h2 > 0.0, h2, 0.01 * h2)

    # out layer
    out = jnp.dot(h2.astype(jnp.bfloat16), w3_ref[...],
                  preferred_element_type=jnp.float32) + b3_ref[...]
    o_ref[...] = out.astype(o_ref.dtype)


def _pallas_forward(x2d, kparams):
    w1, b1, w2, b2, w3, b3 = kparams
    B = x2d.shape[0]
    TB = _pick_tile(B)

    # Weights / biases: same block every step -> stay resident in VMEM.
    resident = lambda shape: pl.BlockSpec(shape, lambda i: (0, 0))

    return pl.pallas_call(
        _mlp_kernel,
        out_shape=jax.ShapeDtypeStruct((B, N_ACTIONS), jnp.float32),
        grid=(pl.cdiv(B, TB),),
        in_specs=[
            pl.BlockSpec((TB, N_STATES), lambda i: (i, 0)),   # x: batch-tiled f32
            resident((N_STATES, H1)), resident((1, H1)),
            resident((H1, H2)),       resident((1, H2)),
            resident((H2, N_ACTIONS)), resident((1, N_ACTIONS)),
        ],
        out_specs=pl.BlockSpec((TB, N_ACTIONS), lambda i: (i, 0)),
        compiler_params=pltpu.CompilerParams(
            dimension_semantics=("parallel",),        # megacore on v7x
            vmem_limit_bytes=24 * 1024 * 1024,        # ample on v5e/v6e/v7x
        ),
    )(x2d, w1, b1, w2, b2, w3, b3)


def _xla_forward(x2d, kparams):
    """Plain-XLA forward mirroring the kernel's numeric path exactly
    (bf16 matmul inputs, f32 accumulation).  Used for tiny batches and as the
    correctness reference."""
    w1, b1, w2, b2, w3, b3 = kparams
    xb = x2d.astype(jnp.bfloat16)
    h1 = jnp.maximum(
        jnp.dot(xb, w1, preferred_element_type=jnp.float32) + b1, 0.0)
    z2 = jnp.dot(h1.astype(jnp.bfloat16), w2,
                 preferred_element_type=jnp.float32) + b2
    h2 = jnp.where(z2 > 0.0, z2, 0.01 * z2)
    return jnp.dot(h2.astype(jnp.bfloat16), w3,
                   preferred_element_type=jnp.float32) + b3


def net_forward(x, kernel_params, use_pallas=None):
    """Equivalent of Net.forward(x): x is flattened to (-1, N_STATES).
    Tiny batches (action selection) route to the jitted XLA path; replay-buffer
    sized batches run the Pallas kernel."""
    x2d = x.reshape(-1, N_STATES).astype(jnp.float32)
    B = x2d.shape[0]
    if use_pallas is None:
        use_pallas = B > _XLA_BATCH_CUTOFF
    if use_pallas:
        return _pallas_forward(x2d, kernel_params)
    return _xla_forward(x2d, kernel_params)


def init_params(key):
    """f32 master parameters mirroring the PyTorch module: weights ~ N(0, 0.1)
    (stored transposed, (in, out)); biases use nn.Linear's default
    Uniform(-1/sqrt(fan_in), 1/sqrt(fan_in))."""
    ks = jax.random.split(key, 6)

    def linear(kw, kb, fan_in, fan_out):
        w = 0.1 * jax.random.normal(kw, (fan_in, fan_out), dtype=jnp.float32)
        bound = 1.0 / jnp.sqrt(jnp.float32(fan_in))
        b = jax.random.uniform(kb, (1, fan_out), dtype=jnp.float32,
                               minval=-bound, maxval=bound)
        return w, b

    w1, b1 = linear(ks[0], ks[1], N_STATES, H1)
    w2, b2 = linear(ks[2], ks[3], H1, H2)
    w3, b3 = linear(ks[4], ks[5], H2, N_ACTIONS)
    return (w1, b1, w2, b2, w3, b3)


def to_kernel_params(master_params):
    """Cast weights to bf16 once for the forward kernel; keep biases f32.
    The f32 master copy stays with the optimizer."""
    w1, b1, w2, b2, w3, b3 = master_params
    return (w1.astype(jnp.bfloat16), b1,
            w2.astype(jnp.bfloat16), b2,
            w3.astype(jnp.bfloat16), b3)


if __name__ == "__main__":
    key = jax.random.PRNGKey(0)
    kp, kx1, kx2, kx3 = jax.random.split(key, 4)
    master = init_params(kp)
    kparams = to_kernel_params(master)

    # 1) Tiny inference-style batch: dispatches to the plain XLA path.
    x_small = jax.random.normal(kx1, (8, N_STATES), dtype=jnp.float32)
    out_small = jax.block_until_ready(net_forward(x_small, kparams))
    ref_small = _xla_forward(x_small, kparams)
    assert out_small.shape == (8, N_ACTIONS), out_small.shape
    assert jnp.allclose(out_small, ref_small, atol=1e-2, rtol=1e-2), \
        "mismatch vs reference (small batch / XLA path)"

    # 2) Small training-style batch forced through the Pallas kernel
    #    (TB=104 -> 2 grid steps with a ragged last tile).
    x_mid = jax.random.normal(kx2, (200, N_STATES), dtype=jnp.float32)
    out_mid = jax.block_until_ready(net_forward(x_mid, kparams, use_pallas=True))
    ref_mid = _xla_forward(x_mid.reshape(-1, N_STATES), kparams)
    assert out_mid.shape == (200, N_ACTIONS), out_mid.shape
    assert jnp.allclose(out_mid, ref_mid, atol=1e-2, rtol=1e-2), \
        "mismatch vs reference (ragged 2-step Pallas path)"

    # 3) Replay-buffer sized batch: TB=512 -> exactly 2 balanced grid steps.
    x_big = jax.random.normal(kx3, (1024, N_STATES), dtype=jnp.float32)
    out_big = jax.block_until_ready(net_forward(x_big, kparams))
    ref_big = _xla_forward(x_big.reshape(-1, N_STATES), kparams)
    assert out_big.shape == (1024, N_ACTIONS), out_big.shape
    assert jnp.allclose(out_big, ref_big, atol=1e-2, rtol=1e-2), \
        "mismatch vs reference (training batch Pallas path)"

    print("KERNEL_OK")
</pallas_src>

<mosaic_0001>
module attributes {stable_mosaic.version = 11 : i64} {
  func.func @_mlp_kernel(%arg0: i32, %arg1: memref<104x16xf32, #tpu.memory_space<vmem>>, %arg2: memref<16x128xbf16, #tpu.memory_space<vmem>>, %arg3: memref<1x128xf32, #tpu.memory_space<vmem>>, %arg4: memref<128x64xbf16, #tpu.memory_space<vmem>>, %arg5: memref<1x64xf32, #tpu.memory_space<vmem>>, %arg6: memref<64x4xbf16, #tpu.memory_space<vmem>>, %arg7: memref<1x4xf32, #tpu.memory_space<vmem>>, %arg8: memref<104x4xf32, #tpu.memory_space<vmem>>) attributes {dimension_semantics = [#tpu.dimension_semantics<parallel>], iteration_bounds = array<i64: 2>, scalar_prefetch = 0 : i64, scratch_operands = 0 : i64, tpu.core_type = #tpu.core_type<tc>, window_params = [{transform_indices = @transform_0, window_bounds = array<i64: 104, 16>}, {pipeline_mode = #tpu.pipeline_mode<synchronous>, transform_indices = @transform_1, window_bounds = array<i64: 16, 128>}, {pipeline_mode = #tpu.pipeline_mode<synchronous>, transform_indices = @transform_2, window_bounds = array<i64: 1, 128>}, {pipeline_mode = #tpu.pipeline_mode<synchronous>, transform_indices = @transform_3, window_bounds = array<i64: 128, 64>}, {pipeline_mode = #tpu.pipeline_mode<synchronous>, transform_indices = @transform_4, window_bounds = array<i64: 1, 64>}, {pipeline_mode = #tpu.pipeline_mode<synchronous>, transform_indices = @transform_5, window_bounds = array<i64: 64, 4>}, {pipeline_mode = #tpu.pipeline_mode<synchronous>, transform_indices = @transform_6, window_bounds = array<i64: 1, 4>}, {transform_indices = @transform_7, window_bounds = array<i64: 104, 4>}]} {
    %c0 = arith.constant 0 : index
    %c0_0 = arith.constant 0 : index
    %0 = vector.load %arg1[%c0, %c0_0] : memref<104x16xf32, #tpu.memory_space<vmem>>, vector<104x16xf32>
    %1 = arith.truncf %0 : vector<104x16xf32> to vector<104x16xbf16>
    %c0_1 = arith.constant 0 : index
    %c0_2 = arith.constant 0 : index
    %2 = vector.load %arg2[%c0_1, %c0_2] : memref<16x128xbf16, #tpu.memory_space<vmem>>, vector<16x128xbf16>
    %cst = arith.constant dense<0.000000e+00> : vector<104x128xf32>
    %3 = tpu.matmul %1, %2, %cst {dimension_numbers = #tpu.dot_dimension_numbers<[1], [0], [0], [1], [0, 0, 1, 1], [], []>} : vector<104x16xbf16>, vector<16x128xbf16>, vector<104x128xf32> -> vector<104x128xf32>
    %c0_3 = arith.constant 0 : index
    %c0_4 = arith.constant 0 : index
    %4 = vector.load %arg3[%c0_3, %c0_4] : memref<1x128xf32, #tpu.memory_space<vmem>>, vector<1x128xf32>
    %5 = vector.broadcast %4 : vector<1x128xf32> to vector<104x128xf32>
    %6 = arith.addf %3, %5 : vector<104x128xf32>
    %cst_5 = arith.constant 0.000000e+00 : f32
    %7 = vector.broadcast %cst_5 : f32 to vector<104x128xf32>
    %8 = arith.maximumf %6, %7 : vector<104x128xf32>
    %9 = arith.truncf %8 : vector<104x128xf32> to vector<104x128xbf16>
    %c0_6 = arith.constant 0 : index
    %c0_7 = arith.constant 0 : index
    %10 = vector.load %arg4[%c0_6, %c0_7] : memref<128x64xbf16, #tpu.memory_space<vmem>>, vector<128x64xbf16>
    %cst_8 = arith.constant dense<0.000000e+00> : vector<104x64xf32>
    %11 = tpu.matmul %9, %10, %cst_8 {dimension_numbers = #tpu.dot_dimension_numbers<[1], [0], [0], [1], [0, 0, 1, 1], [], []>} : vector<104x128xbf16>, vector<128x64xbf16>, vector<104x64xf32> -> vector<104x64xf32>
    %c0_9 = arith.constant 0 : index
    %c0_10 = arith.constant 0 : index
    %12 = vector.load %arg5[%c0_9, %c0_10] : memref<1x64xf32, #tpu.memory_space<vmem>>, vector<1x64xf32>
    %13 = vector.broadcast %12 : vector<1x64xf32> to vector<104x64xf32>
    %14 = arith.addf %11, %13 : vector<104x64xf32>
    %cst_11 = arith.constant 0.000000e+00 : f32
    %15 = vector.broadcast %cst_11 : f32 to vector<104x64xf32>
    %16 = arith.cmpf ogt, %14, %15 : vector<104x64xf32>
    %cst_12 = arith.constant 0.00999999977 : f32
    %17 = vector.broadcast %cst_12 : f32 to vector<104x64xf32>
    %18 = arith.mulf %17, %14 : vector<104x64xf32>
    %19 = arith.select %16, %14, %18 : vector<104x64xi1>, vector<104x64xf32>
    %20 = arith.truncf %19 : vector<104x64xf32> to vector<104x64xbf16>
    %c0_13 = arith.constant 0 : index
    %c0_14 = arith.constant 0 : index
    %21 = vector.load %arg6[%c0_13, %c0_14] : memref<64x4xbf16, #tpu.memory_space<vmem>>, vector<64x4xbf16>
    %cst_15 = arith.constant dense<0.000000e+00> : vector<104x4xf32>
    %22 = tpu.matmul %20, %21, %cst_15 {dimension_numbers = #tpu.dot_dimension_numbers<[1], [0], [0], [1], [0, 0, 1, 1], [], []>} : vector<104x64xbf16>, vector<64x4xbf16>, vector<104x4xf32> -> vector<104x4xf32>
    %c0_16 = arith.constant 0 : index
    %c0_17 = arith.constant 0 : index
    %23 = vector.load %arg7[%c0_16, %c0_17] : memref<1x4xf32, #tpu.memory_space<vmem>>, vector<1x4xf32>
    %24 = vector.broadcast %23 : vector<1x4xf32> to vector<104x4xf32>
    %25 = arith.addf %22, %24 : vector<104x4xf32>
    %c0_18 = arith.constant 0 : index
    %c0_19 = arith.constant 0 : index
    %26 = vector.load %arg8[%c0_18, %c0_19] : memref<104x4xf32, #tpu.memory_space<vmem>>, vector<104x4xf32>
    tpu.vector_store %arg8[%c0_18, %c0_19], %25 {strides = array<i32>} : memref<104x4xf32, #tpu.memory_space<vmem>>, vector<104x4xf32>,
    return
  }
  func.func @transform_0(%arg0: i32) -> (i32, i32) {
    %c0_i32 = arith.constant 0 : i32
    %c0_i32_0 = arith.constant 0 : i32
    return %arg0, %c0_i32 : i32, i32
  }
  func.func @transform_1(%arg0: i32) -> (i32, i32) {
    %c0_i32 = arith.constant 0 : i32
    %c0_i32_0 = arith.constant 0 : i32
    %c0_i32_1 = arith.constant 0 : i32
    return %c0_i32, %c0_i32_0 : i32, i32
  }
  func.func @transform_2(%arg0: i32) -> (i32, i32) {
    %c0_i32 = arith.constant 0 : i32
    %c0_i32_0 = arith.constant 0 : i32
    %c0_i32_1 = arith.constant 0 : i32
    return %c0_i32, %c0_i32_0 : i32, i32
  }
  func.func @transform_3(%arg0: i32) -> (i32, i32) {
    %c0_i32 = arith.constant 0 : i32
    %c0_i32_0 = arith.constant 0 : i32
    %c0_i32_1 = arith.constant 0 : i32
    return %c0_i32, %c0_i32_0 : i32, i32
  }
  func.func @transform_4(%arg0: i32) -> (i32, i32) {
    %c0_i32 = arith.constant 0 : i32
    %c0_i32_0 = arith.constant 0 : i32
    %c0_i32_1 = arith.constant 0 : i32
    return %c0_i32, %c0_i32_0 : i32, i32
  }
  func.func @transform_5(%arg0: i32) -> (i32, i32) {
    %c0_i32 = arith.constant 0 : i32
    %c0_i32_0 = arith.constant 0 : i32
    %c0_i32_1 = arith.constant 0 : i32
    return %c0_i32, %c0_i32_0 : i32, i32
  }
  func.func @transform_6(%arg0: i32) -> (i32, i32) {
    %c0_i32 = arith.constant 0 : i32
    %c0_i32_0 = arith.constant 0 : i32
    %c0_i32_1 = arith.constant 0 : i32
    return %c0_i32, %c0_i32_0 : i32, i32
  }
  func.func @transform_7(%arg0: i32) -> (i32, i32) {
    %c0_i32 = arith.constant 0 : i32
    %c0_i32_0 = arith.constant 0 : i32
    return %arg0, %c0_i32 : i32, i32
  }
}

</mosaic_0001>

<llo_original>
// kernel: tpu_custom_call.1
$region0: #{tpu_custom_call.1}
  #allocation0 [shape = 'u32[]', space=smem, size = 0x4, offset = 0x4, fixed_abs, tag = 'smem constant byte address 0x4 - core index']
  #allocation1 [shape = 'u32[72,128]{1,0:T(1,128)}', space=vmem, size = 0x9000, scoped, tag = 'internal scratch']
  %s0 = inlined_call_operand.vmem [shape: f32[200,16], index: 0, kind: input, shape index: {}]
  %s1 = inlined_call_operand.vmem [shape: bf16[16,128], index: 1, kind: input, shape index: {}]
  %s2 = inlined_call_operand.vmem [shape: f32[1,128], index: 2, kind: input, shape index: {}]
  %s3 = inlined_call_operand.vmem [shape: bf16[128,64], index: 3, kind: input, shape index: {}]
  %s4 = inlined_call_operand.vmem [shape: f32[1,64], index: 4, kind: input, shape index: {}]
  %s5 = inlined_call_operand.vmem [shape: bf16[64,4], index: 5, kind: input, shape index: {}]
  %s6 = inlined_call_operand.vmem [shape: f32[1,4], index: 6, kind: input, shape index: {}]
  %s7 = inlined_call_operand.vmem [shape: f32[200,4], index: 7, kind: output, shape index: {}]
  %s8 = sld [smem:[#allocation0]]
  $region109: #{tpu_custom_call.1} parent=0
    _
  %s10 = ssub.s32 1, %s8
  %s11 = scalar_select 0, %s10, %s8
  $region1: #{tpu_custom_call.1} parent=0
    #allocation2 [shape = 'u8[106496]{0}', space=vmem, size = 0x1a000, scoped, tag = 'output window, operand 0']
    loop: start=0, step=1, limit=4
    $region2: #{tpu_custom_call.1} parent=1 // loop_pre_header
      _
    $region3: #{tpu_custom_call.1} parent=1 // loop_header
      %s13 = sphi 0, %s17
      %p14 = scmp.ge.s32.totalorder %s13, 4
      %s23 = sphi 0, %s25
      %s26 = sphi 0, %s23
      %s27 = sphi 0, %s26
      %s43 = sphi 0, %s27
      %s47 = sphi 0, %s47
      %s49 = sphi 0, %s47
      %s50 = sphi 0, %s49
      %s64 = sphi 0, %s50
      %s68 = sphi 0, %s68
      %s70 = sphi 0, %s68
      %s71 = sphi 0, %s70
      %s85 = sphi 0, %s71
      %s89 = sphi 0, %s89
      %s91 = sphi 0, %s89
      %s92 = sphi 0, %s91
      %s106 = sphi 0, %s92
      %s110 = sphi 0, %s110
      %s112 = sphi 0, %s110
      %s113 = sphi 0, %s112
      %s127 = sphi 0, %s113
      %s131 = sphi 0, %s131
      %s133 = sphi 0, %s131
      %s134 = sphi 0, %s133
      %s148 = sphi 0, %s134
      %s152 = sphi 0, %s152
      %s154 = sphi 0, %s152
      %s155 = sphi 0, %s154
      %s169 = sphi 0, %s155
      %s175 = sphi 0, %s177
      %s178 = sphi 0, %s175
      %s179 = sphi 0, %s178
      %s195 = sphi 0, %s179
    $region4: #{tpu_custom_call.1} parent=1 // loop_header_branch
      %16 = sbr.rel (%p14) target = $region8
    $region5: #{tpu_custom_call.1} parent=1 // loop_body
      %s18 = ssub.s32 %s13, 1
      %s19 = ssub.s32 %s13, 2
      %s20 = sadd.s32 %s13, 1
      %s21 = ssub.s32 %s13, %s20
      %p22 = scmp.eq.s32.totalorder %s21, 0
      %s24 = sadd.s32 %s23, 1
      %s25 = scalar_select %p22, %s23, %s24
      %p28 = pneg %p22
      %p29 = scmp.eq.s32.totalorder %s13, 1
      %p30 = por %p28, %p29
      %p31 = scmp.ne.s32.totalorder %s23, %s26
      %p32 = scmp.eq.s32.totalorder %s13, 0
      %p33 = por %p31, %p32
      %p34 = scmp.ne.s32.totalorder %s23, %s26
      %p35 = scmp.eq.s32.totalorder %s18, 1
      %p36 = por %p34, %p35
      %p37 = scmp.ne.s32.totalorder %s26, %s27
      %p38 = scmp.eq.s32.totalorder %s18, 0
      %p39 = por %p37, %p38
      %p40 = scmp.ne.s32.totalorder %s26, %s27
      %p41 = scmp.eq.s32.totalorder %s19, 1
      %p42 = por %p40, %p41
      %p44 = scmp.ne.s32.totalorder %s27, %s43
      %p45 = scmp.eq.s32.totalorder %s19, 0
      %p46 = por %p44, %p45
      %s48 = sadd.s32 %s47, 1
      %p51 = scmp.eq.s32.totalorder %s13, 1
      %p52 = scmp.ne.s32.totalorder %s47, %s49
      %p53 = scmp.eq.s32.totalorder %s13, 0
      %p54 = por %p52, %p53
      %p55 = scmp.ne.s32.totalorder %s47, %s49
      %p56 = scmp.eq.s32.totalorder %s18, 1
      %p57 = por %p55, %p56
      %p58 = scmp.ne.s32.totalorder %s49, %s50
      %p59 = scmp.eq.s32.totalorder %s18, 0
      %p60 = por %p58, %p59
      %p61 = scmp.ne.s32.totalorder %s49, %s50
      %p62 = scmp.eq.s32.totalorder %s19, 1
      %p63 = por %p61, %p62
      %p65 = scmp.ne.s32.totalorder %s50, %s64
      %p66 = scmp.eq.s32.totalorder %s19, 0
      %p67 = por %p65, %p66
      %s69 = sadd.s32 %s68, 1
      %p72 = scmp.eq.s32.totalorder %s13, 1
      %p73 = scmp.ne.s32.totalorder %s68, %s70
      %p74 = scmp.eq.s32.totalorder %s13, 0
      %p75 = por %p73, %p74
      %p76 = scmp.ne.s32.totalorder %s68, %s70
      %p77 = scmp.eq.s32.totalorder %s18, 1
      %p78 = por %p76, %p77
      %p79 = scmp.ne.s32.totalorder %s70, %s71
      %p80 = scmp.eq.s32.totalorder %s18, 0
      %p81 = por %p79, %p80
      %p82 = scmp.ne.s32.totalorder %s70, %s71
      %p83 = scmp.eq.s32.totalorder %s19, 1
      %p84 = por %p82, %p83
      %p86 = scmp.ne.s32.totalorder %s71, %s85
      %p87 = scmp.eq.s32.totalorder %s19, 0
      %p88 = por %p86, %p87
      %s90 = sadd.s32 %s89, 1
      %p93 = scmp.eq.s32.totalorder %s13, 1
      %p94 = scmp.ne.s32.totalorder %s89, %s91
      %p95 = scmp.eq.s32.totalorder %s13, 0
      %p96 = por %p94, %p95
      %p97 = scmp.ne.s32.totalorder %s89, %s91
      %p98 = scmp.eq.s32.totalorder %s18, 1
      %p99 = por %p97, %p98
      %p100 = scmp.ne.s32.totalorder %s91, %s92
      %p101 = scmp.eq.s32.totalorder %s18, 0
      %p102 = por %p100, %p101
      %p103 = scmp.ne.s32.totalorder %s91, %s92
      %p104 = scmp.eq.s32.totalorder %s19, 1
      %p105 = por %p103, %p104
      %p107 = scmp.ne.s32.totalorder %s92, %s106
      %p108 = scmp.eq.s32.totalorder %s19, 0
      %p109 = por %p107, %p108
      %s111 = sadd.s32 %s110, 1
      %p114 = scmp.eq.s32.totalorder %s13, 1
      %p115 = scmp.ne.s32.totalorder %s110, %s112
      %p116 = scmp.eq.s32.totalorder %s13, 0
      %p117 = por %p115, %p116
      %p118 = scmp.ne.s32.totalorder %s110, %s112
      %p119 = scmp.eq.s32.totalorder %s18, 1
      %p120 = por %p118, %p119
      %p121 = scmp.ne.s32.totalorder %s112, %s113
      %p122 = scmp.eq.s32.totalorder %s18, 0
      %p123 = por %p121, %p122
      %p124 = scmp.ne.s32.totalorder %s112, %s113
      %p125 = scmp.eq.s32.totalorder %s19, 1
      %p126 = por %p124, %p125
      %p128 = scmp.ne.s32.totalorder %s113, %s127
      %p129 = scmp.eq.s32.totalorder %s19, 0
      %p130 = por %p128, %p129
      %s132 = sadd.s32 %s131, 1
      %p135 = scmp.eq.s32.totalorder %s13, 1
      %p136 = scmp.ne.s32.totalorder %s131, %s133
      %p137 = scmp.eq.s32.totalorder %s13, 0
      %p138 = por %p136, %p137
      %p139 = scmp.ne.s32.totalorder %s131, %s133
      %p140 = scmp.eq.s32.totalorder %s18, 1
      %p141 = por %p139, %p140
      %p142 = scmp.ne.s32.totalorder %s133, %s134
      %p143 = scmp.eq.s32.totalorder %s18, 0
      %p144 = por %p142, %p143
      %p145 = scmp.ne.s32.totalorder %s133, %s134
      %p146 = scmp.eq.s32.totalorder %s19, 1
      %p147 = por %p145, %p146
      %p149 = scmp.ne.s32.totalorder %s134, %s148
      %p150 = scmp.eq.s32.totalorder %s19, 0
      %p151 = por %p149, %p150
      %s153 = sadd.s32 %s152, 1
      %p156 = scmp.eq.s32.totalorder %s13, 1
      %p157 = scmp.ne.s32.totalorder %s152, %s154
      %p158 = scmp.eq.s32.totalorder %s13, 0
      %p159 = por %p157, %p158
      %p160 = scmp.ne.s32.totalorder %s152, %s154
      %p161 = scmp.eq.s32.totalorder %s18, 1
      %p162 = por %p160, %p161
      %p163 = scmp.ne.s32.totalorder %s154, %s155
      %p164 = scmp.eq.s32.totalorder %s18, 0
      %p165 = por %p163, %p164
      %p166 = scmp.ne.s32.totalorder %s154, %s155
      %p167 = scmp.eq.s32.totalorder %s19, 1
      %p168 = por %p166, %p167
      %p170 = scmp.ne.s32.totalorder %s155, %s169
      %p171 = scmp.eq.s32.totalorder %s19, 0
      %p172 = por %p170, %p171
      %s173 = ssub.s32 %s13, %s20
      %p174 = scmp.eq.s32.totalorder %s173, 0
      %s176 = sadd.s32 %s175, 1
      %s177 = scalar_select %p174, %s175, %s176
      %p180 = pneg %p174
      %p181 = scmp.eq.s32.totalorder %s13, 1
      %p182 = por %p180, %p181
      %p183 = scmp.ne.s32.totalorder %s175, %s178
      %p184 = scmp.eq.s32.totalorder %s13, 0
      %p185 = por %p183, %p184
      %p186 = scmp.ne.s32.totalorder %s175, %s178
      %p187 = scmp.eq.s32.totalorder %s18, 1
      %p188 = por %p186, %p187
      %p189 = scmp.ne.s32.totalorder %s178, %s179
      %p190 = scmp.eq.s32.totalorder %s18, 0
      %p191 = por %p189, %p190
      %p192 = scmp.ne.s32.totalorder %s178, %s179
      %p193 = scmp.eq.s32.totalorder %s19, 1
      %p194 = por %p192, %p193
      %p196 = scmp.ne.s32.totalorder %s179, %s195
      %p197 = scmp.eq.s32.totalorder %s19, 0
      %p198 = por %p196, %p197
      %p199 = scmp.le.s32.totalorder 1, %s13
      %p200 = scmp.lt.s32.totalorder %s13, 3
      %p201 = pnand %p199, %p200
      %p202 = pneg %p201
      // Predicated region
      $region9: #{tpu_custom_call.1} parent=5 // pred_check
        _
      $region10: #{tpu_custom_call.1} parent=5 // pred_check_branch
        %204 = sbr.rel (%p201) target = $region12
      $region11: #{tpu_custom_call.1} parent=5 // pred_region
        %s205 = ssub.s32 %s13, 1
        // Predicated region
        $region13: #{tpu_custom_call.1} parent=11 // pred_check
          %p206 = pneg %p60
        $region14: #{tpu_custom_call.1} parent=11 // pred_check_branch
          %208 = sbr.rel (%p206) target = $region16
        $region15: #{tpu_custom_call.1} parent=11 // pred_region
          _
        $region16: #{tpu_custom_call.1} parent=11 // pred_fallthru
          _
        // Predicated region
        $region17: #{tpu_custom_call.1} parent=11 // pred_check
          %p209 = pneg %p81
        $region18: #{tpu_custom_call.1} parent=11 // pred_check_branch
          %211 = sbr.rel (%p209) target = $region20
        $region19: #{tpu_custom_call.1} parent=11 // pred_region
          _
        $region20: #{tpu_custom_call.1} parent=11 // pred_fallthru
          _
        // Predicated region
        $region21: #{tpu_custom_call.1} parent=11 // pred_check
          %p212 = pneg %p102
        $region22: #{tpu_custom_call.1} parent=11 // pred_check_branch
          %214 = sbr.rel (%p212) target = $region24
        $region23: #{tpu_custom_call.1} parent=11 // pred_region
          _
        $region24: #{tpu_custom_call.1} parent=11 // pred_fallthru
          _
        // Predicated region
        $region25: #{tpu_custom_call.1} parent=11 // pred_check
          %p215 = pneg %p123
        $region26: #{tpu_custom_call.1} parent=11 // pred_check_branch
          %217 = sbr.rel (%p215) target = $region28
        $region27: #{tpu_custom_call.1} parent=11 // pred_region
          _
        $region28: #{tpu_custom_call.1} parent=11 // pred_fallthru
          _
        // Predicated region
        $region29: #{tpu_custom_call.1} parent=11 // pred_check
          %p218 = pneg %p144
        $region30: #{tpu_custom_call.1} parent=11 // pred_check_branch
          %220 = sbr.rel (%p218) target = $region32
        $region31: #{tpu_custom_call.1} parent=11 // pred_region
          _
        $region32: #{tpu_custom_call.1} parent=11 // pred_fallthru
          _
        // Predicated region
        $region33: #{tpu_custom_call.1} parent=11 // pred_check
          %p221 = pneg %p165
        $region34: #{tpu_custom_call.1} parent=11 // pred_check_branch
          %223 = sbr.rel (%p221) target = $region36
        $region35: #{tpu_custom_call.1} parent=11 // pred_region
          _
        $region36: #{tpu_custom_call.1} parent=11 // pred_fallthru
          _
      $region12: #{tpu_custom_call.1} parent=5 // pred_fallthru
        _
      %p224 = scmp.lt.s32.totalorder %s13, 2
      // Predicated region
      $region37: #{tpu_custom_call.1} parent=5 // pred_check
        %p225 = pneg %p224
      $region38: #{tpu_custom_call.1} parent=5 // pred_check_branch
        %227 = sbr.rel (%p225) target = $region40
      $region39: #{tpu_custom_call.1} parent=5 // pred_region
        // Predicated region
        $region41: #{tpu_custom_call.1} parent=39 // pred_check
          %p228 = pneg %p33
        $region42: #{tpu_custom_call.1} parent=39 // pred_check_branch
          %230 = sbr.rel (%p228) target = $region44
        $region43: #{tpu_custom_call.1} parent=39 // pred_region
          %s231 = smul.u32 13, %s13
          %s232 = ssub.s32 25, %s231
          %p233 = scmp.lt.s32.totalorder %s232, 13
          %s234 = scalar_select %p233, %s232, 13
          %s235 = smul.u32 8, %s234
          %p236 = scmp.lt.s32.totalorder %s231, 24
          %s237 = scalar_select %p236, %s231, 24
          %s238 = smul.addr %s237, 8
          %s239 = scalar_lea.vmem %s0, %s238
          %s240 = smul.u32 13, %s13
          %s241 = ssub.s32 25, %s240
          %p242 = scmp.lt.s32.totalorder %s241, 13
          %s243 = scalar_select %p242, %s241, 13
          %s244 = smul.u32 8, %s243
        $region44: #{tpu_custom_call.1} parent=39 // pred_fallthru
          _
      $region40: #{tpu_custom_call.1} parent=5 // pred_fallthru
        _
      %p245 = scmp.le.s32.totalorder 1, %s13
      %p246 = scmp.lt.s32.totalorder %s13, 3
      %p247 = pnand %p245, %p246
      %p248 = pneg %p247
      // Predicated region
      $region45: #{tpu_custom_call.1} parent=5 // pred_check
        _
      $region46: #{tpu_custom_call.1} parent=5 // pred_check_branch
        %250 = sbr.rel (%p247) target = $region48
      $region47: #{tpu_custom_call.1} parent=5 // pred_region
        %s251 = ssub.s32 %s13, 1
        %s252 = smul.u32 13, %s18
        %s253 = ssub.s32 25, %s252
        %p254 = scmp.lt.s32.totalorder %s253, 13
        %s255 = scalar_select %p254, %s253, 13
        %s256 = smul.u32 8, %s255
        %p257 = scmp.lt.s32.totalorder %s252, 24
        %s258 = scalar_select %p257, %s252, 24
        %s259 = smul.addr %s258, 8
        %s260 = scalar_lea.vmem %s0, %s259
        %p261 = pneg %p39
        %p262 = pneg %p36
        %p263 = pneg %p60
        %p264 = pneg %p57
        %p265 = pneg %p81
        %p266 = pneg %p78
        %p267 = pneg %p102
        %p268 = pneg %p99
        %p269 = pneg %p123
        %p270 = pneg %p120
        %p271 = pneg %p144
        %p272 = pneg %p141
        %p273 = pneg %p165
        %p274 = pneg %p162
        %p275 = pneg %p191
        %p276 = pneg %p188
        %s277 = sand.u32 %s178, 1
        %s278 = sand.u32 %s178, 1
        %s279 = smul.addr %s278, 104
        %s280 = scalar_lea.vmem [#allocation2], %s279
        %s281 = smul.u32 13, %s18
        %s282 = ssub.s32 25, %s281
        %p283 = scmp.lt.s32.totalorder %s282, 13
        %s284 = scalar_select %p283, %s282, 13
        %s285 = smul.u32 8, %s284
        %p286 = scmp.lt.s32.totalorder %s281, 24
        %s287 = scalar_select %p286, %s281, 24
        %s288 = smul.addr %s287, 8
        %s289 = scalar_lea.vmem %s0, %s288
        %s290 = smul.u32 13, %s18
        %s291 = ssub.s32 25, %s290
        %p292 = scmp.lt.s32.totalorder %s291, 13
        %s293 = scalar_select %p292, %s291, 13
        %s294 = smul.u32 8, %s293
        %s295 = smul.u32 13, %s18
        %s296 = ssub.s32 25, %s295
        %p297 = scmp.lt.s32.totalorder %s296, 13
        %s298 = scalar_select %p297, %s296, 13
        %s299 = smul.u32 8, %s298
        %v301 = vld [vmem:[%s289] sm:$0xff]
        %v302 = vld [vmem:[%s289 + $0x8] sm:$0xff]
        %v303 = vld [vmem:[%s289 + $0x10] sm:$0xff]
        %v304 = vld [vmem:[%s289 + $0x18] sm:$0xff]
        %v305 = vld [vmem:[%s289 + $0x20] sm:$0xff]
        %v306 = vld [vmem:[%s289 + $0x28] sm:$0xff]
        %v307 = vld [vmem:[%s289 + $0x30] sm:$0xff]
        %v308 = vld [vmem:[%s289 + $0x38] sm:$0xff]
        %v309 = vld [vmem:[%s289 + $0x40] sm:$0xff]
        %v310 = vld [vmem:[%s289 + $0x48] sm:$0xff]
        %v311 = vld [vmem:[%s289 + $0x50] sm:$0xff]
        %v312 = vld [vmem:[%s289 + $0x58] sm:$0xff]
        %v313 = vld [vmem:[%s289 + $0x60] sm:$0xff]
        %v314 = vpack.c.bf16 %v302, %v301
        %v315 = vpack.c.bf16 %v304, %v303
        %v316 = vpack.c.bf16 %v306, %v305
        %v317 = vpack.c.bf16 %v308, %v307
        %v318 = vpack.c.bf16 %v310, %v309
        %v319 = vpack.c.bf16 %v312, %v311
        %v320 = vpack.c.bf16 %v313, %v313
        %v321 = vld [vmem:[%s1] sm:$0xf]
        %v322 = vld [vmem:[%s1 + $0x4] sm:$0xf]
        %v323 = vld [vmem:[%s2] sm:$0x1]
        %v325 = vperm.slane %v323, 0
        %v329 = vunpack.c.l.b16 %v321
        %v330 = vunpack.c.l.b16 %v322
        %v331 = vpack.c.b16 %v330, %v329
        %vm333 = vcmask 130048
        %v335 = vsel %vm333, %v314, 0
        %v338 = vsel %vm333, %v315, 0
        %v341 = vsel %vm333, %v316, 0
        %v344 = vsel %vm333, %v317, 0
        %v347 = vsel %vm333, %v318, 0
        %v350 = vsel %vm333, %v319, 0
        %v353 = vsel %vm333, %v320, 0
        %355 = vmatpush.bf16.msra.mxu0 0
        %356 = vmatpush.bf16.msra.mxu0 0
        %357 = vmatpush.bf16.msra.mxu0 0
        %358 = vmatpush.bf16.msra.mxu0 0
        %359 = vmatpush.bf16.msra.mxu0 0
        %360 = vmatpush.bf16.msra.mxu0 0
        %361 = vmatpush.bf16.msra.mxu0 0
        %362 = vmatpush.bf16.msra.mxu0 %v331
        %363 = vmatmul.bf16.gmra.mxu0 %v335
        %v364 = vpop.f32.mrf.mxu0
        %v365 = vadd.f32 %v325, %v364
        %v366 = vpop.f32.mrf.mxu0
        %v367 = vadd.f32 %v325, %v366
        %368 = vmatmul.bf16.gmra.mxu0 %v338
        %v369 = vpop.f32.mrf.mxu0
        %v370 = vadd.f32 %v325, %v369
        %v371 = vpop.f32.mrf.mxu0
        %v372 = vadd.f32 %v325, %v371
        %373 = vmatmul.bf16.gmra.mxu0 %v341
        %v374 = vpop.f32.mrf.mxu0
        %v375 = vadd.f32 %v325, %v374
        %v376 = vpop.f32.mrf.mxu0
        %v377 = vadd.f32 %v325, %v376
        %378 = vmatmul.bf16.gmra.mxu0 %v344
        %v379 = vpop.f32.mrf.mxu0
        %v380 = vadd.f32 %v325, %v379
        %v381 = vpop.f32.mrf.mxu0
        %v382 = vadd.f32 %v325, %v381
        %383 = vmatmul.bf16.gmra.mxu0 %v347
        %v384 = vpop.f32.mrf.mxu0
        %v385 = vadd.f32 %v325, %v384
        %v386 = vpop.f32.mrf.mxu0
        %v387 = vadd.f32 %v325, %v386
        %388 = vmatmul.bf16.gmra.mxu0 %v350
        %v389 = vpop.f32.mrf.mxu0
        %v390 = vadd.f32 %v325, %v389
        %v391 = vpop.f32.mrf.mxu0
        %v392 = vadd.f32 %v325, %v391
        %393 = vmatmul.bf16.gmra.mxu0 %v353
        %v394 = vpop.f32.mrf.mxu0
        %v395 = vadd.f32 %v325, %v394
        %v396 = vpop.f32.mrf.mxu0
        %397 = vdwg.mxu0
        %v398 = vmax.f32 %v365, 0.0
        %v399 = vmax.f32 %v367, 0.0
        %v400 = vmax.f32 %v370, 0.0
        %v401 = vmax.f32 %v372, 0.0
        %v402 = vmax.f32 %v375, 0.0
        %v403 = vmax.f32 %v377, 0.0
        %v404 = vmax.f32 %v380, 0.0
        %v405 = vmax.f32 %v382, 0.0
        %v406 = vmax.f32 %v385, 0.0
        %v407 = vmax.f32 %v387, 0.0
        %v408 = vmax.f32 %v390, 0.0
        %v409 = vmax.f32 %v392, 0.0
        %v410 = vmax.f32 %v395, 0.0
        %v411 = vpack.c.bf16 %v399, %v398
        %v412 = vpack.c.bf16 %v401, %v400
        %v413 = vpack.c.bf16 %v403, %v402
        %v414 = vpack.c.bf16 %v405, %v404
        %v415 = vpack.c.bf16 %v407, %v406
        %v416 = vpack.c.bf16 %v409, %v408
        %v417 = vpack.c.bf16 %v410, %v410
        %v418 = vld [vmem:[%s3] sm:$0xf]
        %v419 = vld [vmem:[%s3 + $0x4] sm:$0xf]
        %v420 = vld [vmem:[%s3 + $0x8] sm:$0xf]
        %v421 = vld [vmem:[%s3 + $0xc] sm:$0xf]
        %v422 = vld [vmem:[%s3 + $0x10] sm:$0xf]
        %v423 = vld [vmem:[%s3 + $0x14] sm:$0xf]
        %v424 = vld [vmem:[%s3 + $0x18] sm:$0xf]
        %v425 = vld [vmem:[%s3 + $0x1c] sm:$0xf]
        %v426 = vld [vmem:[%s3 + $0x20] sm:$0xf]
        %v427 = vld [vmem:[%s3 + $0x24] sm:$0xf]
        %v428 = vld [vmem:[%s3 + $0x28] sm:$0xf]
        %v429 = vld [vmem:[%s3 + $0x2c] sm:$0xf]
        %v430 = vld [vmem:[%s3 + $0x30] sm:$0xf]
        %v431 = vld [vmem:[%s3 + $0x34] sm:$0xf]
        %v432 = vld [vmem:[%s3 + $0x38] sm:$0xf]
        %v433 = vld [vmem:[%s3 + $0x3c] sm:$0xf]
        %v434 = vld [vmem:[%s4] sm:$0x1]
        %v436 = vperm.slane %v434, 0
        %v454 = vunpack.c.l.b16 %v418
        %v455 = vunpack.c.l.b16 %v419
        %v456 = vunpack.c.l.b16 %v420
        %v457 = vunpack.c.l.b16 %v421
        %v458 = vunpack.c.l.b16 %v422
        %v459 = vunpack.c.l.b16 %v423
        %v460 = vunpack.c.l.b16 %v424
        %v461 = vunpack.c.l.b16 %v425
        %v462 = vunpack.c.l.b16 %v426
        %v463 = vunpack.c.l.b16 %v427
        %v464 = vunpack.c.l.b16 %v428
        %v465 = vunpack.c.l.b16 %v429
        %v466 = vunpack.c.l.b16 %v430
        %v467 = vunpack.c.l.b16 %v431
        %v468 = vunpack.c.l.b16 %v432
        %v469 = vunpack.c.l.b16 %v433
        %v470 = vpack.c.b16 %v455, %v454
        %v471 = vpack.c.b16 %v457, %v456
        %v472 = vpack.c.b16 %v459, %v458
        %v473 = vpack.c.b16 %v461, %v460
        %v474 = vpack.c.b16 %v463, %v462
        %v475 = vpack.c.b16 %v465, %v464
        %v476 = vpack.c.b16 %v467, %v466
        %v477 = vpack.c.b16 %v469, %v468
        %486 = vmatpush.bf16.msra.mxu0 %v477
        %487 = vmatpush.bf16.msra.mxu0 %v476
        %488 = vmatpush.bf16.msra.mxu0 %v475
        %489 = vmatpush.bf16.msra.mxu0 %v474
        %490 = vmatpush.bf16.msra.mxu0 %v473
        %491 = vmatpush.bf16.msra.mxu0 %v472
        %492 = vmatpush.bf16.msra.mxu0 %v471
        %493 = vmatpush.bf16.msra.mxu0 %v470
        %494 = vmatmul.bf16.gmra.mxu0 %v411
        %v495 = vpop.f32.mrf.mxu0
        %v496 = vadd.f32 %v436, %v495
        %v497 = vpop.f32.mrf.mxu0
        %v498 = vadd.f32 %v436, %v497
        %499 = vmatmul.bf16.gmra.mxu0 %v412
        %v500 = vpop.f32.mrf.mxu0
        %v501 = vadd.f32 %v436, %v500
        %v502 = vpop.f32.mrf.mxu0
        %v503 = vadd.f32 %v436, %v502
        %504 = vmatmul.bf16.gmra.mxu0 %v413
        %v505 = vpop.f32.mrf.mxu0
        %v506 = vadd.f32 %v436, %v505
        %v507 = vpop.f32.mrf.mxu0
        %v508 = vadd.f32 %v436, %v507
        %509 = vmatmul.bf16.gmra.mxu0 %v414
        %v510 = vpop.f32.mrf.mxu0
        %v511 = vadd.f32 %v436, %v510
        %v512 = vpop.f32.mrf.mxu0
        %v513 = vadd.f32 %v436, %v512
        %514 = vmatmul.bf16.gmra.mxu0 %v415
        %v515 = vpop.f32.mrf.mxu0
        %v516 = vadd.f32 %v436, %v515
        %v517 = vpop.f32.mrf.mxu0
        %v518 = vadd.f32 %v436, %v517
        %519 = vmatmul.bf16.gmra.mxu0 %v416
        %v520 = vpop.f32.mrf.mxu0
        %v521 = vadd.f32 %v436, %v520
        %v522 = vpop.f32.mrf.mxu0
        %v523 = vadd.f32 %v436, %v522
        %524 = vmatmul.bf16.gmra.mxu0 %v417
        %v525 = vpop.f32.mrf.mxu0
        %v526 = vadd.f32 %v436, %v525
        %v527 = vpop.f32.mrf.mxu0
        %528 = vdwg.mxu0
        %vm529 = vcmp.gt.f32.partialorder %v496, 0.0
        %vm530 = vcmp.gt.f32.partialorder %v498, 0.0
        %vm531 = vcmp.gt.f32.partialorder %v501, 0.0
        %vm532 = vcmp.gt.f32.partialorder %v503, 0.0
        %vm533 = vcmp.gt.f32.partialorder %v506, 0.0
        %vm534 = vcmp.gt.f32.partialorder %v508, 0.0
        %vm535 = vcmp.gt.f32.partialorder %v511, 0.0
        %vm536 = vcmp.gt.f32.partialorder %v513, 0.0
        %vm537 = vcmp.gt.f32.partialorder %v516, 0.0
        %vm538 = vcmp.gt.f32.partialorder %v518, 0.0
        %vm539 = vcmp.gt.f32.partialorder %v521, 0.0
        %vm540 = vcmp.gt.f32.partialorder %v523, 0.0
        %vm541 = vcmp.gt.f32.partialorder %v526, 0.0
        %v542 = vmul.f32 %v496, 0.01
        %v543 = vmul.f32 %v498, 0.01
        %v544 = vmul.f32 %v501, 0.01
        %v545 = vmul.f32 %v503, 0.01
        %v546 = vmul.f32 %v506, 0.01
        %v547 = vmul.f32 %v508, 0.01
        %v548 = vmul.f32 %v511, 0.01
        %v549 = vmul.f32 %v513, 0.01
        %v550 = vmul.f32 %v516, 0.01
        %v551 = vmul.f32 %v518, 0.01
        %v552 = vmul.f32 %v521, 0.01
        %v553 = vmul.f32 %v523, 0.01
        %v554 = vmul.f32 %v526, 0.01
        %v555 = vsel %vm529, %v496, %v542
        %v556 = vsel %vm530, %v498, %v543
        %v557 = vsel %vm531, %v501, %v544
        %v558 = vsel %vm532, %v503, %v545
        %v559 = vsel %vm533, %v506, %v546
        %v560 = vsel %vm534, %v508, %v547
        %v561 = vsel %vm535, %v511, %v548
        %v562 = vsel %vm536, %v513, %v549
        %v563 = vsel %vm537, %v516, %v550
        %v564 = vsel %vm538, %v518, %v551
        %v565 = vsel %vm539, %v521, %v552
        %v566 = vsel %vm540, %v523, %v553
        %v567 = vsel %vm541, %v526, %v554
        %v568 = vpack.c.bf16 %v556, %v555
        %v569 = vpack.c.bf16 %v558, %v557
        %v570 = vpack.c.bf16 %v560, %v559
        %v571 = vpack.c.bf16 %v562, %v561
        %v572 = vpack.c.bf16 %v564, %v563
        %v573 = vpack.c.bf16 %v566, %v565
        %v574 = vpack.c.bf16 %v567, %v567
        %v575 = vld [vmem:[%s5] sm:$0xf]
        %v576 = vld [vmem:[%s5 + $0x4] sm:$0xf]
        %v577 = vld [vmem:[%s5 + $0x8] sm:$0xf]
        %v578 = vld [vmem:[%s5 + $0xc] sm:$0xf]
        %v579 = vld [vmem:[%s5 + $0x10] sm:$0xf]
        %v580 = vld [vmem:[%s5 + $0x14] sm:$0xf]
        %v581 = vld [vmem:[%s5 + $0x18] sm:$0xf]
        %v582 = vld [vmem:[%s5 + $0x1c] sm:$0xf]
        %v583 = vld [vmem:[%s6] sm:$0x1]
        %v585 = vperm.slane %v583, 0
        %v595 = vunpack.c.l.b16 %v575
        %v596 = vunpack.c.l.b16 %v576
        %v597 = vunpack.c.l.b16 %v577
        %v598 = vunpack.c.l.b16 %v578
        %v599 = vunpack.c.l.b16 %v579
        %v600 = vunpack.c.l.b16 %v580
        %v601 = vunpack.c.l.b16 %v581
        %v602 = vunpack.c.l.b16 %v582
        %v603 = vpack.c.b16 %v596, %v595
        %v604 = vpack.c.b16 %v598, %v597
        %v605 = vpack.c.b16 %v600, %v599
        %v606 = vpack.c.b16 %v602, %v601
        %vm611 = vcmask 523264
        %v613 = vsel %vm611, %v568, 0
        %v616 = vsel %vm611, %v569, 0
        %v619 = vsel %vm611, %v570, 0
        %v622 = vsel %vm611, %v571, 0
        %v625 = vsel %vm611, %v572, 0
        %v628 = vsel %vm611, %v573, 0
        %v631 = vsel %vm611, %v574, 0
        %633 = vmatpush.bf16.msra.mxu0 0
        %634 = vmatpush.bf16.msra.mxu0 0
        %635 = vmatpush.bf16.msra.mxu0 0
        %636 = vmatpush.bf16.msra.mxu0 0
        %637 = vmatpush.bf16.msra.mxu0 %v606
        %638 = vmatpush.bf16.msra.mxu0 %v605
        %639 = vmatpush.bf16.msra.mxu0 %v604
        %640 = vmatpush.bf16.msra.mxu0 %v603
        %641 = vmatmul.bf16.gmra.mxu0 %v613
        %v642 = vpop.f32.mrf.mxu0
        %v643 = vadd.f32 %v585, %v642
        %v644 = vpop.f32.mrf.mxu0
        %v645 = vadd.f32 %v585, %v644
        %646 = vmatmul.bf16.gmra.mxu0 %v616
        %v647 = vpop.f32.mrf.mxu0
        %v648 = vadd.f32 %v585, %v647
        %v649 = vpop.f32.mrf.mxu0
        %v650 = vadd.f32 %v585, %v649
        %651 = vmatmul.bf16.gmra.mxu0 %v619
        %v652 = vpop.f32.mrf.mxu0
        %v653 = vadd.f32 %v585, %v652
        %v654 = vpop.f32.mrf.mxu0
        %v655 = vadd.f32 %v585, %v654
        %656 = vmatmul.bf16.gmra.mxu0 %v622
        %v657 = vpop.f32.mrf.mxu0
        %v658 = vadd.f32 %v585, %v657
        %v659 = vpop.f32.mrf.mxu0
        %v660 = vadd.f32 %v585, %v659
        %661 = vmatmul.bf16.gmra.mxu0 %v625
        %v662 = vpop.f32.mrf.mxu0
        %v663 = vadd.f32 %v585, %v662
        %v664 = vpop.f32.mrf.mxu0
        %v665 = vadd.f32 %v585, %v664
        %666 = vmatmul.bf16.gmra.mxu0 %v628
        %v667 = vpop.f32.mrf.mxu0
        %v668 = vadd.f32 %v585, %v667
        %v669 = vpop.f32.mrf.mxu0
        %v670 = vadd.f32 %v585, %v669
        %671 = vmatmul.bf16.gmra.mxu0 %v631
        %v672 = vpop.f32.mrf.mxu0
        %v673 = vadd.f32 %v585, %v672
        %v674 = vpop.f32.mrf.mxu0
        %675 = vdwg.mxu0
        %vm676 = vcmask 31744
        %677 = vst.msk [vmem:[%s280] sm:$0xff] %vm676, %v643
        %678 = vst.msk [vmem:[%s280 + $0x8] sm:$0xff] %vm676, %v645
        %679 = vst.msk [vmem:[%s280 + $0x10] sm:$0xff] %vm676, %v648
        %680 = vst.msk [vmem:[%s280 + $0x18] sm:$0xff] %vm676, %v650
        %681 = vst.msk [vmem:[%s280 + $0x20] sm:$0xff] %vm676, %v653
        %682 = vst.msk [vmem:[%s280 + $0x28] sm:$0xff] %vm676, %v655
        %683 = vst.msk [vmem:[%s280 + $0x30] sm:$0xff] %vm676, %v658
        %684 = vst.msk [vmem:[%s280 + $0x38] sm:$0xff] %vm676, %v660
        %685 = vst.msk [vmem:[%s280 + $0x40] sm:$0xff] %vm676, %v663
        %686 = vst.msk [vmem:[%s280 + $0x48] sm:$0xff] %vm676, %v665
        %687 = vst.msk [vmem:[%s280 + $0x50] sm:$0xff] %vm676, %v668
        %688 = vst.msk [vmem:[%s280 + $0x58] sm:$0xff] %vm676, %v670
        %689 = vst.msk [vmem:[%s280 + $0x60] sm:$0xff] %vm676, %v673
        %s690 = sand.u32 %s178, 1
        %s691 = sand.u32 %s178, 1
        %s692 = smul.addr %s691, 104
        %s693 = scalar_lea.vmem [#allocation2], %s692
        // Predicated region
        $region49: #{tpu_custom_call.1} parent=47 // pred_check
          %p694 = pneg %p188
        $region50: #{tpu_custom_call.1} parent=47 // pred_check_branch
          %696 = sbr.rel (%p694) target = $region52
        $region51: #{tpu_custom_call.1} parent=47 // pred_region
          %s697 = smul.u32 13, %s18
          %s698 = ssub.s32 25, %s697
          %p699 = scmp.lt.s32.totalorder %s698, 13
          %s700 = scalar_select %p699, %s698, 13
          %s701 = smul.u32 8, %s700
          %p702 = scmp.ne.s32.totalorder 0, %s701
          %s703 = smul.addr %s697, 8
          %s704 = scalar_lea.vmem %s7, %s703
          // Predicated region
          $region53: #{tpu_custom_call.1} parent=51 // pred_check
            %p705 = pneg %p702
          $region54: #{tpu_custom_call.1} parent=51 // pred_check_branch
            %707 = sbr.rel (%p705) target = $region56
          $region55: #{tpu_custom_call.1} parent=51 // pred_region
            // Predicated region
            $region57: #{tpu_custom_call.1} parent=55 // pred_check
              _
            $region58: #{tpu_custom_call.1} parent=55 // pred_check_branch
              %709 = sbr.rel (0) target = $region60
            $region59: #{tpu_custom_call.1} parent=55 // pred_region
              // Predicated region
              $region79: #{tpu_custom_call.1} parent=59 // pred_check
                _
              $region80: #{tpu_custom_call.1} parent=59 // pred_check_branch
                %784 = sbr.rel (0) target = $region82
              $region81: #{tpu_custom_call.1} parent=59 // pred_region
                %s785 = sdiv.u32.pop %s700, 13
                %s786 = srem.u32.pop %s700, 13
                // While loop
                $region83: #{tpu_custom_call.1} parent=81 // loop_pre_header
                  _
                $region84: #{tpu_custom_call.1} parent=81 // loop_header
                  %s788 = sphi 0, %s790
                  %p789 = scmp.ge.s32.totalorder %s788, %s785
                  %s793 = sphi 0, %s824
                  %s794 = sphi %s693, %s827
                  %s795 = sphi %s704, %s828
                $region85: #{tpu_custom_call.1} parent=81 // loop_header_branch
                  %792 = sbr.rel (%p789) target = $region89
                $region86: #{tpu_custom_call.1} parent=81 // loop_body
                  %v796 = vld [vmem:[%s794] sm:$0xff]
                  %797 = vst [vmem:[%s795] sm:$0xff] %v796
                  %v798 = vld [vmem:[%s794 + $0x8] sm:$0xff]
                  %799 = vst [vmem:[%s795 + $0x8] sm:$0xff] %v798
                  %v800 = vld [vmem:[%s794 + $0x10] sm:$0xff]
                  %801 = vst [vmem:[%s795 + $0x10] sm:$0xff] %v800
                  %v802 = vld [vmem:[%s794 + $0x18] sm:$0xff]
                  %803 = vst [vmem:[%s795 + $0x18] sm:$0xff] %v802
                  %v804 = vld [vmem:[%s794 + $0x20] sm:$0xff]
                  %805 = vst [vmem:[%s795 + $0x20] sm:$0xff] %v804
                  %v806 = vld [vmem:[%s794 + $0x28] sm:$0xff]
                  %807 = vst [vmem:[%s795 + $0x28] sm:$0xff] %v806
                  %v808 = vld [vmem:[%s794 + $0x30] sm:$0xff]
                  %809 = vst [vmem:[%s795 + $0x30] sm:$0xff] %v808
                  %v810 = vld [vmem:[%s794 + $0x38] sm:$0xff]
                  %811 = vst [vmem:[%s795 + $0x38] sm:$0xff] %v810
                  %v812 = vld [vmem:[%s794 + $0x40] sm:$0xff]
                  %813 = vst [vmem:[%s795 + $0x40] sm:$0xff] %v812
                  %v814 = vld [vmem:[%s794 + $0x48] sm:$0xff]
                  %815 = vst [vmem:[%s795 + $0x48] sm:$0xff] %v814
                  %v816 = vld [vmem:[%s794 + $0x50] sm:$0xff]
                  %817 = vst [vmem:[%s795 + $0x50] sm:$0xff] %v816
                  %v818 = vld [vmem:[%s794 + $0x58] sm:$0xff]
                  %819 = vst [vmem:[%s795 + $0x58] sm:$0xff] %v818
                  %v820 = vld [vmem:[%s794 + $0x60] sm:$0xff]
                  %821 = vst [vmem:[%s795 + $0x60] sm:$0xff] %v820
                  %s822 = sadd.s32 1, %s793
                  %p823 = scmp.ge.s32.totalorder %s822, %s785
                  %s824 = scalar_select %p823, 0, %s822
                  %s825 = smul.u32 %s824, 104
                  %s826 = smul.u32 %s824, 104
                  %s827 = scalar_lea.vmem %s693, %s825 [#allocation2]
                  %s828 = scalar_lea.vmem %s704, %s826
                $region87: #{tpu_custom_call.1} parent=81 // loop_footer
                  %s790 = sadd.s32 %s788, 1
                $region88: #{tpu_custom_call.1} parent=81 // loop_footer_branch
                  %787 = sbr.rel target = $region84
                $region89: #{tpu_custom_call.1} parent=81 // loop_exit
                  _
                %s829 = sdiv.u32.pop %s700, 13
                %s830 = srem.u32.pop %s700, 13
                %s831 = smul.u32 %s829, 13
                %s832 = smul.u32 8, %s831
                %s833 = scalar_lea.vmem %s693, %s832 [#allocation2]
                %s834 = smul.u32 8, %s831
                %s835 = scalar_lea.vmem %s704, %s834
                // While loop
                $region90: #{tpu_custom_call.1} parent=81 // loop_pre_header
                  _
                $region91: #{tpu_custom_call.1} parent=81 // loop_header
                  %s837 = sphi 0, %s839
                  %p838 = scmp.ge.s32.totalorder %s837, %s830
                  %s842 = sphi 0, %s849
                  %s843 = sphi %s833, %s852
                  %s844 = sphi %s835, %s853
                $region92: #{tpu_custom_call.1} parent=81 // loop_header_branch
                  %841 = sbr.rel (%p838) target = $region96
                $region93: #{tpu_custom_call.1} parent=81 // loop_body
                  %v845 = vld [vmem:[%s843] sm:$0xff]
                  %846 = vst [vmem:[%s844] sm:$0xff] %v845
                  %s847 = sadd.s32 1, %s842
                  %p848 = scmp.ge.s32.totalorder %s847, %s830
                  %s849 = scalar_select %p848, 0, %s847
                  %s850 = smul.u32 %s849, 8
                  %s851 = smul.u32 %s849, 8
                  %s852 = scalar_lea.vmem %s833, %s850 [#allocation2]
                  %s853 = scalar_lea.vmem %s835, %s851
                $region94: #{tpu_custom_call.1} parent=81 // loop_footer
                  %s839 = sadd.s32 %s837, 1
                $region95: #{tpu_custom_call.1} parent=81 // loop_footer_branch
                  %836 = sbr.rel target = $region91
                $region96: #{tpu_custom_call.1} parent=81 // loop_exit
                  _
              $region82: #{tpu_custom_call.1} parent=59 // pred_fallthru
                _
              // Predicated region
              $region97: #{tpu_custom_call.1} parent=59 // pred_check
                _
              $region98: #{tpu_custom_call.1} parent=59 // pred_check_branch
                %855 = sbr.rel target = $region100
              $region99: #{tpu_custom_call.1} parent=59 // pred_region
                _
              $region100: #{tpu_custom_call.1} parent=59 // pred_fallthru
                _
            $region60: #{tpu_custom_call.1} parent=55 // pred_fallthru
              _
            // Predicated region
            $region61: #{tpu_custom_call.1} parent=55 // pred_check
              _
            $region62: #{tpu_custom_call.1} parent=55 // pred_check_branch
              %711 = sbr.rel target = $region64
            $region63: #{tpu_custom_call.1} parent=55 // pred_region
              %s713 = ssub.s32 256, 1
              %s714 = sdiv.u32.pop %s700, 13
              %s715 = srem.u32.pop %s700, 13
              // While loop
              $region65: #{tpu_custom_call.1} parent=63 // loop_pre_header
                _
              $region66: #{tpu_custom_call.1} parent=63 // loop_header
                %s717 = sphi 0, %s719
                %p718 = scmp.ge.s32.totalorder %s717, %s714
                %s722 = sphi 0, %s753
                %s723 = sphi %s693, %s756
                %s724 = sphi %s704, %s757
              $region67: #{tpu_custom_call.1} parent=63 // loop_header_branch
                %721 = sbr.rel (%p718) target = $region71
              $region68: #{tpu_custom_call.1} parent=63 // loop_body
                %v725 = vld [vmem:[%s723] sm:%s713]
                %726 = vst [vmem:[%s724] sm:%s713] %v725
                %v727 = vld [vmem:[%s723 + $0x8] sm:%s713]
                %728 = vst [vmem:[%s724 + $0x8] sm:%s713] %v727
                %v729 = vld [vmem:[%s723 + $0x10] sm:%s713]
                %730 = vst [vmem:[%s724 + $0x10] sm:%s713] %v729
                %v731 = vld [vmem:[%s723 + $0x18] sm:%s713]
                %732 = vst [vmem:[%s724 + $0x18] sm:%s713] %v731
                %v733 = vld [vmem:[%s723 + $0x20] sm:%s713]
                %734 = vst [vmem:[%s724 + $0x20] sm:%s713] %v733
                %v735 = vld [vmem:[%s723 + $0x28] sm:%s713]
                %736 = vst [vmem:[%s724 + $0x28] sm:%s713] %v735
                %v737 = vld [vmem:[%s723 + $0x30] sm:%s713]
                %738 = vst [vmem:[%s724 + $0x30] sm:%s713] %v737
                %v739 = vld [vmem:[%s723 + $0x38] sm:%s713]
                %740 = vst [vmem:[%s724 + $0x38] sm:%s713] %v739
                %v741 = vld [vmem:[%s723 + $0x40] sm:%s713]
                %742 = vst [vmem:[%s724 + $0x40] sm:%s713] %v741
                %v743 = vld [vmem:[%s723 + $0x48] sm:%s713]
                %744 = vst [vmem:[%s724 + $0x48] sm:%s713] %v743
                %v745 = vld [vmem:[%s723 + $0x50] sm:%s713]
                %746 = vst [vmem:[%s724 + $0x50] sm:%s713] %v745
                %v747 = vld [vmem:[%s723 + $0x58] sm:%s713]
                %748 = vst [vmem:[%s724 + $0x58] sm:%s713] %v747
                %v749 = vld [vmem:[%s723 + $0x60] sm:%s713]
                %750 = vst [vmem:[%s724 + $0x60] sm:%s713] %v749
                %s751 = sadd.s32 1, %s722
                %p752 = scmp.ge.s32.totalorder %s751, %s714
                %s753 = scalar_select %p752, 0, %s751
                %s754 = smul.u32 %s753, 104
                %s755 = smul.u32 %s753, 104
                %s756 = scalar_lea.vmem %s693, %s754 [#allocation2]
                %s757 = scalar_lea.vmem %s704, %s755
              $region69: #{tpu_custom_call.1} parent=63 // loop_footer
                %s719 = sadd.s32 %s717, 1
              $region70: #{tpu_custom_call.1} parent=63 // loop_footer_branch
                %716 = sbr.rel target = $region66
              $region71: #{tpu_custom_call.1} parent=63 // loop_exit
                _
              %s758 = sdiv.u32.pop %s700, 13
              %s759 = srem.u32.pop %s700, 13
              %s760 = smul.u32 %s758, 13
              %s761 = smul.u32 8, %s760
              %s762 = scalar_lea.vmem %s693, %s761 [#allocation2]
              %s763 = smul.u32 8, %s760
              %s764 = scalar_lea.vmem %s704, %s763
              // While loop
              $region72: #{tpu_custom_call.1} parent=63 // loop_pre_header
                _
              $region73: #{tpu_custom_call.1} parent=63 // loop_header
                %s766 = sphi 0, %s768
                %p767 = scmp.ge.s32.totalorder %s766, %s759
                %s771 = sphi 0, %s778
                %s772 = sphi %s762, %s781
                %s773 = sphi %s764, %s782
              $region74: #{tpu_custom_call.1} parent=63 // loop_header_branch
                %770 = sbr.rel (%p767) target = $region78
              $region75: #{tpu_custom_call.1} parent=63 // loop_body
                %v774 = vld [vmem:[%s772] sm:%s713]
                %775 = vst [vmem:[%s773] sm:%s713] %v774
                %s776 = sadd.s32 1, %s771
                %p777 = scmp.ge.s32.totalorder %s776, %s759
                %s778 = scalar_select %p777, 0, %s776
                %s779 = smul.u32 %s778, 8
                %s780 = smul.u32 %s778, 8
                %s781 = scalar_lea.vmem %s762, %s779 [#allocation2]
                %s782 = scalar_lea.vmem %s764, %s780
              $region76: #{tpu_custom_call.1} parent=63 // loop_footer
                %s768 = sadd.s32 %s766, 1
              $region77: #{tpu_custom_call.1} parent=63 // loop_footer_branch
                %765 = sbr.rel target = $region73
              $region78: #{tpu_custom_call.1} parent=63 // loop_exit
                _
            $region64: #{tpu_custom_call.1} parent=55 // pred_fallthru
              _
          $region56: #{tpu_custom_call.1} parent=51 // pred_fallthru
            _
          %856 = vnop
        $region52: #{tpu_custom_call.1} parent=47 // pred_fallthru
          _
      $region48: #{tpu_custom_call.1} parent=5 // pred_fallthru
        _
      %p857 = scmp.le.s32.totalorder 2, %s13
      // Predicated region
      $region101: #{tpu_custom_call.1} parent=5 // pred_check
        %p858 = pneg %p857
      $region102: #{tpu_custom_call.1} parent=5 // pred_check_branch
        %860 = sbr.rel (%p858) target = $region104
      $region103: #{tpu_custom_call.1} parent=5 // pred_region
        %s861 = ssub.s32 %s13, 2
        // Predicated region
        $region105: #{tpu_custom_call.1} parent=103 // pred_check
          %p862 = pneg %p194
        $region106: #{tpu_custom_call.1} parent=103 // pred_check_branch
          %864 = sbr.rel (%p862) target = $region108
        $region107: #{tpu_custom_call.1} parent=103 // pred_region
          %s865 = sand.u32 %s179, 1
          %s866 = sand.u32 %s179, 1
          %s867 = smul.addr %s866, 104
          %s868 = scalar_lea.vmem [#allocation2], %s867
        $region108: #{tpu_custom_call.1} parent=103 // pred_fallthru
          _
      $region104: #{tpu_custom_call.1} parent=5 // pred_fallthru
        _
    $region6: #{tpu_custom_call.1} parent=1 // loop_footer
      %s17 = sadd.s32 1, %s13
    $region7: #{tpu_custom_call.1} parent=1 // loop_footer_branch
      %12 = sbr.rel target = $region3
    $region8: #{tpu_custom_call.1} parent=1 // loop_exit
      _

</llo_original>
